<compile_context>
chip_gen: v7x
topology: tpu7x:2x2x1
jax: 0.10.0
libtpu: 0.0.40
codegen_flags: <defaults>
</compile_context>

<pallas_src>
import jax
import jax.numpy as jnp
import numpy as np
from jax import lax
from jax.experimental import pallas as pl
from jax.experimental.pallas import tpu as pltpu

# ----------------------------- static sizes -----------------------------
N = 16                 # number of graph nodes
FEAT = 16              # feat_dim
HID = 32               # hidden_dim
OUT = 8                # output_dim
K = 3                  # poly_order
INIT_POLY_COEFF = 2.0  # init_poly_coeff

# The in-kernel realisation of torch's `.view(-1, K+1)` regrouping assumes the
# polynomial count divides the node count (true here: 16 % 4 == 0).
assert N % (K + 1) == 0

# ---------------- packed constant-slab layout (packed once, at init) ----------------
# One (SLAB_ROWS, SLAB_COLS) f32 block holding every model constant.
# All multi-row slices start at a multiple of 8 (sublane-aligned).
SLAB_COLS = HID                         # 32 lanes
ROW_ADJ = 0                             # rows [0, 64)    : cums[k]*adj^k stacked, cols [0, N)
ROW_W1 = (K + 1) * N                    # rows [64, 80)   : fc1 weight (FEAT, HID)
ROW_W2 = ROW_W1 + FEAT                  # rows [80, 112)  : fc2 weight (HID, OUT) in cols [0, OUT)
ROW_WL = ROW_W2 + HID                   # rows [112, 117) : learnable_weight rows, cols [0, OUT)  (112 % 8 == 0)
ROW_B1 = 120                            # row 120         : fc1 bias (HID,)
ROW_B2 = 121                            # row 121         : fc2 bias (OUT,)
ROW_BL = 122                            # row 122         : learnable_weight bias, pre-broadcast across lanes
SLAB_ROWS = 128                         # pad sublanes to a multiple of 8
assert ROW_WL % 8 == 0 and ROW_WL + K + 2 <= ROW_B1


# ------------------------------ fused kernel ------------------------------
def _sim2poly_kernel(feat_ref, slab_ref, out_ref):
    pp = slab_ref[...]                                   # (SLAB_ROWS, SLAB_COLS)

    # ---- unpack constants (all sublane-aligned static views) ----
    adjp = pp[ROW_ADJ:ROW_ADJ + (K + 1) * N, 0:N]        # (64, 16)  cums[k]*adj^k stacked
    w1 = pp[ROW_W1:ROW_W1 + FEAT, 0:HID]                 # (16, 32)
    w2 = pp[ROW_W2:ROW_W2 + HID, 0:OUT]                  # (32, 8)
    wl = pp[ROW_WL:ROW_WL + K + 2, 0:OUT]                # (5, 8)    learnable_weight rows
    b1 = pp[ROW_B1:ROW_B1 + 1, 0:HID]                    # (1, 32)
    b2 = pp[ROW_B2:ROW_B2 + 1, 0:OUT]                    # (1, 8)
    bl_row = pp[ROW_BL:ROW_BL + 1, 0:N]                  # (1, 16)   bias already broadcast over lanes

    # ---- 2-layer MLP (Dropout == identity in eval mode) ----
    h = jnp.dot(feat_ref[...], w1, preferred_element_type=jnp.float32) + b1
    h = jnp.maximum(h, 0.0)                              # ReLU
    z = jnp.dot(h, w2, preferred_element_type=jnp.float32) + b2            # (N, OUT)

    # ---- polynomial propagation: ONE batched matmul over pre-scaled adj powers ----
    # coefficients are folded into adjp at init, so p_all == vstack(xs).
    p_all = jnp.dot(adjp, z, preferred_element_type=jnp.float32)           # ((K+1)*N, OUT)

    # ---- learnable_weight scores with node index in LANES (lane-dense A·Bᵀ) ----
    #   s[j, k*N + n] = sum_d wl_row_j[d] * xs[k][n, d]
    s = lax.dot_general(wl, p_all, (((1,), (1,)), ((), ())),
                        preferred_element_type=jnp.float32)                # (K+2, (K+1)*N)

    # raw_flat[k*N + n] = hstack(xs)[n] @ wl[:(K+1)*OUT] + xs[k][n] @ wl[(K+1)*OUT:] + bl
    ref_row = bl_row                                      # bl folded in with one row add
    for k in range(K + 1):
        ref_row = ref_row + s[k:k + 1, k * N:(k + 1) * N]
    s_v = s[K + 1:K + 2, :]                               # (1, (K+1)*N)
    rows = [ref_row + s_v[:, k * N:(k + 1) * N] for k in range(K + 1)]
    raw_kn = jnp.concatenate(rows, axis=0)                # (K+1, N): raw_flat[k*N + n]

    # ---- sigmoid -> softmax numerators, honouring the reference .view(-1, K+1) ----
    # sigmoid bounds raw to (0,1), so exp never overflows -> no max-subtraction needed.
    #   wraw[r, c] = raw_flat[(K+1)*r + c] = raw_kn[r // G, (K+1)*(r % G) + c],  G = N // (K+1)
    e_kn = jnp.exp(jax.nn.sigmoid(raw_kn))                # (K+1, N)
    G = N // (K + 1)
    e_rep = jnp.concatenate(
        [jnp.broadcast_to(e_kn[k:k + 1, :], (G, N)) for k in range(K + 1)], axis=0)  # (N, N)
    row_id = lax.broadcasted_iota(jnp.int32, (N, N), 0)
    col_id = lax.broadcasted_iota(jnp.int32, (N, N), 1)
    base = (K + 1) * (row_id % G)
    num = []
    for c in range(K + 1):
        sel = jnp.where(col_id == base + c, e_rep, 0.0)
        num.append(jnp.sum(sel, axis=1, keepdims=True))   # (N, 1) softmax numerator of col c
    den = num[0]
    for c in range(1, K + 1):
        den = den + num[c]
    inv_den = pl.reciprocal(den, approx=True)             # ~1e-4 rel err; approx=False for exact parity

    # ---- two_dim_weighted_add ----
    acc = num[0] * p_all[0:N, :]
    for c in range(1, K + 1):
        acc = acc + num[c] * p_all[c * N:(c + 1) * N, :]
    out_ref[...] = acc * inv_den


# ------------------------------ wrapper ---------------------------------
@jax.jit
def sim2layer_poly_forward(feature, const_slab):
    vmem = pl.BlockSpec(memory_space=pltpu.MemorySpace.VMEM)
    # NOTE: for a *batched* workload, add a leading grid axis marked "parallel"
    # (dimension_semantics) so both v7x TensorCores get work and stack graphs
    # along sublanes to fill the 256x256 MXU; a single 16-node graph stays grid-less.
    return pl.pallas_call(
        _sim2poly_kernel,
        out_shape=jax.ShapeDtypeStruct((N, OUT), jnp.float32),
        in_specs=[vmem, vmem],
        out_specs=vmem,
        cost_estimate=pl.CostEstimate(flops=48_000, transcendentals=160,
                                      bytes_accessed=17_920),
    )(feature, const_slab)


# -------------------- init-time preprocessing helpers --------------------
def pack_const_slab(adj, coeff, w1, b1, w2, b2, wl, bl):
    """Fold cumulative poly coefficients into the adjacency powers and pack every
    model constant into one VMEM slab (one DMA instead of three + SMEM).
    All of this is parameter-only init-time preprocessing."""
    cums = jnp.cumprod(coeff)                             # cums[k] = prod_{j<=k} coeff[j]
    pows = [jnp.eye(N, dtype=jnp.float32)]
    for _ in range(K):
        pows.append(adj @ pows[-1])
    adj_scaled = jnp.concatenate([cums[k] * pows[k] for k in range(K + 1)], axis=0)  # (64, 16)

    slab = jnp.zeros((SLAB_ROWS, SLAB_COLS), jnp.float32)
    slab = slab.at[ROW_ADJ:ROW_ADJ + (K + 1) * N, 0:N].set(adj_scaled)
    slab = slab.at[ROW_W1:ROW_W1 + FEAT, 0:HID].set(w1)
    slab = slab.at[ROW_W2:ROW_W2 + HID, 0:OUT].set(w2)
    slab = slab.at[ROW_WL:ROW_WL + K + 2, 0:OUT].set(wl.reshape(K + 2, OUT))
    slab = slab.at[ROW_B1, 0:HID].set(b1.reshape(-1))
    slab = slab.at[ROW_B2, 0:OUT].set(b2.reshape(-1))
    slab = slab.at[ROW_BL, :].set(jnp.full((SLAB_COLS,), bl[0], jnp.float32))
    return slab


# ------------------------- pure-JAX reference ---------------------------
def reference(feature, adj, w1, b1, w2, b2, wl, bl, coeff):
    x = jnp.maximum(feature @ w1 + b1, 0.0)
    x = x @ w2 + b2
    xs = [coeff[0] * x]
    for L in range(1, K + 1):
        xs.append(coeff[L] * (adj @ xs[-1]))
    reference_feat = jnp.tile(jnp.concatenate(xs, axis=1), (K + 1, 1))
    adopted = jnp.concatenate([reference_feat, jnp.concatenate(xs, axis=0)], axis=1)
    raw = adopted @ wl + bl
    w = jax.nn.softmax(jax.nn.sigmoid(raw.reshape(-1, K + 1)), axis=1)
    return sum(w[:, k:k + 1] * xs[k] for k in range(K + 1))


if __name__ == "__main__":
    key = jax.random.PRNGKey(0)
    k_feat, k_adj, k1, k2, k3, kb1, kb2, kb3 = jax.random.split(key, 8)

    feature = jax.random.normal(k_feat, (N, FEAT), jnp.float32)

    # deterministic symmetric normalized adjacency (stand-in for self.adj)
    a = jax.random.uniform(k_adj, (N, N), jnp.float32)
    a = 0.5 * (a + a.T) + jnp.eye(N, dtype=jnp.float32)
    deg = jnp.sum(a, axis=1, keepdims=True)
    adj = a / jnp.sqrt(deg) / jnp.sqrt(deg.T)

    # parameters (deterministic; [in, out] layout, i.e. x @ W + b)
    w1 = jax.random.normal(k1, (FEAT, HID), jnp.float32) / np.sqrt(FEAT)
    b1 = jax.random.normal(kb1, (1, HID), jnp.float32) * 0.1
    w2 = jax.random.normal(k2, (HID, OUT), jnp.float32) / np.sqrt(HID)
    b2 = jax.random.normal(kb2, (1, OUT), jnp.float32) * 0.1
    wl = jax.random.normal(k3, ((K + 2) * OUT, 1), jnp.float32) / np.sqrt((K + 2) * OUT)
    bl = jax.random.normal(kb3, (1,), jnp.float32) * 0.1

    # poly_coeff params initialized exactly as in __init__: min(1/init_poly_coeff, 1)
    theta = jnp.full((K + 1,), min(1.0 / INIT_POLY_COEFF, 1.0), jnp.float32)
    coeff = jnp.float32(INIT_POLY_COEFF) * jnp.tanh(theta)   # glue: init_poly_coeff * tanh(theta)

    # one-time (init-level) preprocessing: single packed constant slab
    const_slab = pack_const_slab(adj, coeff, w1, b1, w2, b2, wl, bl)

    # TODO(synk): training-mode Dropout(0.5), the conv=='bern' branch, and the
    # query_edges!=None branch (self.linear on edge pairs) are not exercised here.
    out = sim2layer_poly_forward(feature, const_slab)
    out = jax.block_until_ready(out)

    ref = reference(feature, adj, w1, b1, w2, b2, wl, bl, coeff)
    np.testing.assert_allclose(np.asarray(out), np.asarray(ref), rtol=2e-2, atol=2e-2)
    print("KERNEL_OK")
</pallas_src>

<mosaic_0001>
module attributes {stable_mosaic.version = 11 : i64} {
  func.func @_sim2poly_kernel(%arg0: memref<16x16xf32, #tpu.memory_space<vmem>>, %arg1: memref<128x32xf32, #tpu.memory_space<vmem>>, %arg2: memref<16x8xf32, #tpu.memory_space<vmem>>) attributes {dimension_semantics = [], scalar_prefetch = 0 : i64, scratch_operands = 0 : i64, tpu.core_type = #tpu.core_type<tc>} {
    %c0 = arith.constant 0 : index
    %c0_0 = arith.constant 0 : index
    %0 = vector.load %arg1[%c0, %c0_0] : memref<128x32xf32, #tpu.memory_space<vmem>>, vector<128x32xf32>
    %1 = vector.extract_strided_slice %0 {offsets = [0, 0], sizes = [64, 16], strides = [1, 1]} : vector<128x32xf32> to vector<64x16xf32>
    %2 = vector.extract_strided_slice %0 {offsets = [64, 0], sizes = [16, 32], strides = [1, 1]} : vector<128x32xf32> to vector<16x32xf32>
    %3 = vector.extract_strided_slice %0 {offsets = [80, 0], sizes = [32, 8], strides = [1, 1]} : vector<128x32xf32> to vector<32x8xf32>
    %4 = vector.extract_strided_slice %0 {offsets = [112, 0], sizes = [5, 8], strides = [1, 1]} : vector<128x32xf32> to vector<5x8xf32>
    %5 = vector.extract_strided_slice %0 {offsets = [120, 0], sizes = [1, 32], strides = [1, 1]} : vector<128x32xf32> to vector<1x32xf32>
    %6 = vector.extract_strided_slice %0 {offsets = [121, 0], sizes = [1, 8], strides = [1, 1]} : vector<128x32xf32> to vector<1x8xf32>
    %7 = vector.extract_strided_slice %0 {offsets = [122, 0], sizes = [1, 16], strides = [1, 1]} : vector<128x32xf32> to vector<1x16xf32>
    %c0_1 = arith.constant 0 : index
    %c0_2 = arith.constant 0 : index
    %8 = vector.load %arg0[%c0_1, %c0_2] : memref<16x16xf32, #tpu.memory_space<vmem>>, vector<16x16xf32>
    %cst = arith.constant dense<0.000000e+00> : vector<16x32xf32>
    %9 = tpu.matmul %8, %2, %cst {dimension_numbers = #tpu.dot_dimension_numbers<[1], [0], [0], [1], [0, 0, 1, 1], [], []>} : vector<16x16xf32>, vector<16x32xf32>, vector<16x32xf32> -> vector<16x32xf32>
    %10 = vector.broadcast %5 : vector<1x32xf32> to vector<16x32xf32>
    %11 = arith.addf %9, %10 : vector<16x32xf32>
    %cst_3 = arith.constant 0.000000e+00 : f32
    %12 = vector.broadcast %cst_3 : f32 to vector<16x32xf32>
    %13 = arith.maximumf %11, %12 : vector<16x32xf32>
    %cst_4 = arith.constant dense<0.000000e+00> : vector<16x8xf32>
    %14 = tpu.matmul %13, %3, %cst_4 {dimension_numbers = #tpu.dot_dimension_numbers<[1], [0], [0], [1], [0, 0, 1, 1], [], []>} : vector<16x32xf32>, vector<32x8xf32>, vector<16x8xf32> -> vector<16x8xf32>
    %15 = vector.broadcast %6 : vector<1x8xf32> to vector<16x8xf32>
    %16 = arith.addf %14, %15 : vector<16x8xf32>
    %cst_5 = arith.constant dense<0.000000e+00> : vector<64x8xf32>
    %17 = tpu.matmul %1, %16, %cst_5 {dimension_numbers = #tpu.dot_dimension_numbers<[1], [0], [0], [1], [0, 0, 1, 1], [], []>} : vector<64x16xf32>, vector<16x8xf32>, vector<64x8xf32> -> vector<64x8xf32>
    %cst_6 = arith.constant dense<0.000000e+00> : vector<5x64xf32>
    %18 = tpu.matmul %4, %17, %cst_6 {dimension_numbers = #tpu.dot_dimension_numbers<[1], [1], [0], [0], [0, 0, 1, 0], [], []>} : vector<5x8xf32>, vector<64x8xf32>, vector<5x64xf32> -> vector<5x64xf32>
    %19 = vector.extract_strided_slice %18 {offsets = [0, 0], sizes = [1, 16], strides = [1, 1]} : vector<5x64xf32> to vector<1x16xf32>
    %20 = arith.addf %7, %19 : vector<1x16xf32>
    %21 = vector.extract_strided_slice %18 {offsets = [1, 16], sizes = [1, 16], strides = [1, 1]} : vector<5x64xf32> to vector<1x16xf32>
    %22 = arith.addf %20, %21 : vector<1x16xf32>
    %23 = vector.extract_strided_slice %18 {offsets = [2, 32], sizes = [1, 16], strides = [1, 1]} : vector<5x64xf32> to vector<1x16xf32>
    %24 = arith.addf %22, %23 : vector<1x16xf32>
    %25 = vector.extract_strided_slice %18 {offsets = [3, 48], sizes = [1, 16], strides = [1, 1]} : vector<5x64xf32> to vector<1x16xf32>
    %26 = arith.addf %24, %25 : vector<1x16xf32>
    %27 = vector.extract_strided_slice %18 {offsets = [4, 0], sizes = [1, 64], strides = [1, 1]} : vector<5x64xf32> to vector<1x64xf32>
    %28 = vector.extract_strided_slice %27 {offsets = [0, 0], sizes = [1, 16], strides = [1, 1]} : vector<1x64xf32> to vector<1x16xf32>
    %29 = arith.addf %26, %28 : vector<1x16xf32>
    %30 = vector.extract_strided_slice %27 {offsets = [0, 16], sizes = [1, 16], strides = [1, 1]} : vector<1x64xf32> to vector<1x16xf32>
    %31 = arith.addf %26, %30 : vector<1x16xf32>
    %32 = vector.extract_strided_slice %27 {offsets = [0, 32], sizes = [1, 16], strides = [1, 1]} : vector<1x64xf32> to vector<1x16xf32>
    %33 = arith.addf %26, %32 : vector<1x16xf32>
    %34 = vector.extract_strided_slice %27 {offsets = [0, 48], sizes = [1, 16], strides = [1, 1]} : vector<1x64xf32> to vector<1x16xf32>
    %35 = arith.addf %26, %34 : vector<1x16xf32>
    %36 = tpu.concatenate %29, %31, %33, %35 in 0 : vector<1x16xf32>, vector<1x16xf32>, vector<1x16xf32>, vector<1x16xf32> -> vector<4x16xf32>
    %37 = arith.negf %36 : vector<4x16xf32>
    %38 = math.exp %37 : vector<4x16xf32>
    %cst_7 = arith.constant 1.000000e+00 : f32
    %39 = vector.broadcast %cst_7 : f32 to vector<4x16xf32>
    %40 = arith.addf %39, %38 : vector<4x16xf32>
    %41 = arith.divf %39, %40 : vector<4x16xf32>
    %42 = math.exp %41 : vector<4x16xf32>
    %43 = vector.extract_strided_slice %42 {offsets = [0, 0], sizes = [1, 16], strides = [1, 1]} : vector<4x16xf32> to vector<1x16xf32>
    %44 = vector.shape_cast %43 : vector<1x16xf32> to vector<1x16xf32>
    %45 = vector.broadcast %44 : vector<1x16xf32> to vector<4x16xf32>
    %46 = vector.extract_strided_slice %42 {offsets = [1, 0], sizes = [1, 16], strides = [1, 1]} : vector<4x16xf32> to vector<1x16xf32>
    %47 = vector.shape_cast %46 : vector<1x16xf32> to vector<1x16xf32>
    %48 = vector.broadcast %47 : vector<1x16xf32> to vector<4x16xf32>
    %49 = vector.extract_strided_slice %42 {offsets = [2, 0], sizes = [1, 16], strides = [1, 1]} : vector<4x16xf32> to vector<1x16xf32>
    %50 = vector.shape_cast %49 : vector<1x16xf32> to vector<1x16xf32>
    %51 = vector.broadcast %50 : vector<1x16xf32> to vector<4x16xf32>
    %52 = vector.extract_strided_slice %42 {offsets = [3, 0], sizes = [1, 16], strides = [1, 1]} : vector<4x16xf32> to vector<1x16xf32>
    %53 = vector.shape_cast %52 : vector<1x16xf32> to vector<1x16xf32>
    %54 = vector.broadcast %53 : vector<1x16xf32> to vector<4x16xf32>
    %55 = tpu.concatenate %45, %48, %51, %54 in 0 : vector<4x16xf32>, vector<4x16xf32>, vector<4x16xf32>, vector<4x16xf32> -> vector<16x16xf32>
    %56 = tpu.iota {dimensions = array<i32: 0>} : vector<16x16xi32>
    %57 = tpu.iota {dimensions = array<i32: 1>} : vector<16x16xi32>
    %c4_i32 = arith.constant 4 : i32
    %c0_i32 = arith.constant 0 : i32
    %58 = arith.cmpi eq, %c4_i32, %c0_i32 : i32
    %c1_i32 = arith.constant 1 : i32
    %59 = arith.select %58, %c1_i32, %c4_i32 : i32
    %60 = vector.broadcast %59 : i32 to vector<16x16xi32>
    %61 = arith.remsi %56, %60 : vector<16x16xi32>
    %c0_i32_8 = arith.constant 0 : i32
    %62 = vector.broadcast %c0_i32_8 : i32 to vector<16x16xi32>
    %63 = arith.cmpi ne, %61, %62 : vector<16x16xi32>
    %c0_i32_9 = arith.constant 0 : i32
    %64 = vector.broadcast %c0_i32_9 : i32 to vector<16x16xi32>
    %65 = arith.cmpi slt, %61, %64 : vector<16x16xi32>
    %c0_i32_10 = arith.constant 0 : i32
    %66 = arith.cmpi slt, %59, %c0_i32_10 : i32
    %67 = vector.broadcast %66 : i1 to vector<16x16xi1>
    %68 = vector.broadcast %67 : vector<16x16xi1> to vector<16x16xi1>
    %69 = arith.xori %65, %68 : vector<16x16xi1>
    %70 = arith.andi %69, %63 : vector<16x16xi1>
    %71 = vector.broadcast %59 : i32 to vector<16x16xi32>
    %72 = arith.addi %61, %71 : vector<16x16xi32>
    %73 = arith.select %70, %72, %61 : vector<16x16xi1>, vector<16x16xi32>
    %c4_i32_11 = arith.constant 4 : i32
    %74 = vector.broadcast %c4_i32_11 : i32 to vector<16x16xi32>
    %75 = arith.muli %74, %73 : vector<16x16xi32>
    %c0_i32_12 = arith.constant 0 : i32
    %76 = vector.broadcast %c0_i32_12 : i32 to vector<16x16xi32>
    %77 = arith.addi %75, %76 : vector<16x16xi32>
    %78 = arith.cmpi eq, %57, %77 : vector<16x16xi32>
    %cst_13 = arith.constant 0.000000e+00 : f32
    %79 = vector.broadcast %cst_13 : f32 to vector<16x16xf32>
    %80 = arith.select %78, %55, %79 : vector<16x16xi1>, vector<16x16xf32>
    %cst_14 = arith.constant dense<0.000000e+00> : vector<16xf32>
    %81 = vector.multi_reduction <add>, %80, %cst_14 [1] : vector<16x16xf32> to vector<16xf32>
    %82 = vector.shape_cast %81 : vector<16xf32> to vector<16x1xf32>
    %c1_i32_15 = arith.constant 1 : i32
    %83 = vector.broadcast %c1_i32_15 : i32 to vector<16x16xi32>
    %84 = arith.addi %75, %83 : vector<16x16xi32>
    %85 = arith.cmpi eq, %57, %84 : vector<16x16xi32>
    %cst_16 = arith.constant 0.000000e+00 : f32
    %86 = vector.broadcast %cst_16 : f32 to vector<16x16xf32>
    %87 = arith.select %85, %55, %86 : vector<16x16xi1>, vector<16x16xf32>
    %cst_17 = arith.constant dense<0.000000e+00> : vector<16xf32>
    %88 = vector.multi_reduction <add>, %87, %cst_17 [1] : vector<16x16xf32> to vector<16xf32>
    %89 = vector.shape_cast %88 : vector<16xf32> to vector<16x1xf32>
    %c2_i32 = arith.constant 2 : i32
    %90 = vector.broadcast %c2_i32 : i32 to vector<16x16xi32>
    %91 = arith.addi %75, %90 : vector<16x16xi32>
    %92 = arith.cmpi eq, %57, %91 : vector<16x16xi32>
    %cst_18 = arith.constant 0.000000e+00 : f32
    %93 = vector.broadcast %cst_18 : f32 to vector<16x16xf32>
    %94 = arith.select %92, %55, %93 : vector<16x16xi1>, vector<16x16xf32>
    %cst_19 = arith.constant dense<0.000000e+00> : vector<16xf32>
    %95 = vector.multi_reduction <add>, %94, %cst_19 [1] : vector<16x16xf32> to vector<16xf32>
    %96 = vector.shape_cast %95 : vector<16xf32> to vector<16x1xf32>
    %c3_i32 = arith.constant 3 : i32
    %97 = vector.broadcast %c3_i32 : i32 to vector<16x16xi32>
    %98 = arith.addi %75, %97 : vector<16x16xi32>
    %99 = arith.cmpi eq, %57, %98 : vector<16x16xi32>
    %cst_20 = arith.constant 0.000000e+00 : f32
    %100 = vector.broadcast %cst_20 : f32 to vector<16x16xf32>
    %101 = arith.select %99, %55, %100 : vector<16x16xi1>, vector<16x16xf32>
    %cst_21 = arith.constant dense<0.000000e+00> : vector<16xf32>
    %102 = vector.multi_reduction <add>, %101, %cst_21 [1] : vector<16x16xf32> to vector<16xf32>
    %103 = vector.shape_cast %102 : vector<16xf32> to vector<16x1xf32>
    %104 = arith.addf %82, %89 : vector<16x1xf32>
    %105 = arith.addf %104, %96 : vector<16x1xf32>
    %106 = arith.addf %105, %103 : vector<16x1xf32>
    %107 = tpu.reciprocal %106 {approx = true} : vector<16x1xf32> -> vector<16x1xf32>
    %108 = vector.extract_strided_slice %17 {offsets = [0, 0], sizes = [16, 8], strides = [1, 1]} : vector<64x8xf32> to vector<16x8xf32>
    %109 = vector.broadcast %82 : vector<16x1xf32> to vector<16x8xf32>
    %110 = arith.mulf %109, %108 : vector<16x8xf32>
    %111 = vector.extract_strided_slice %17 {offsets = [16, 0], sizes = [16, 8], strides = [1, 1]} : vector<64x8xf32> to vector<16x8xf32>
    %112 = vector.broadcast %89 : vector<16x1xf32> to vector<16x8xf32>
    %113 = arith.mulf %112, %111 : vector<16x8xf32>
    %114 = arith.addf %110, %113 : vector<16x8xf32>
    %115 = vector.extract_strided_slice %17 {offsets = [32, 0], sizes = [16, 8], strides = [1, 1]} : vector<64x8xf32> to vector<16x8xf32>
    %116 = vector.broadcast %96 : vector<16x1xf32> to vector<16x8xf32>
    %117 = arith.mulf %116, %115 : vector<16x8xf32>
    %118 = arith.addf %114, %117 : vector<16x8xf32>
    %119 = vector.extract_strided_slice %17 {offsets = [48, 0], sizes = [16, 8], strides = [1, 1]} : vector<64x8xf32> to vector<16x8xf32>
    %120 = vector.broadcast %103 : vector<16x1xf32> to vector<16x8xf32>
    %121 = arith.mulf %120, %119 : vector<16x8xf32>
    %122 = arith.addf %118, %121 : vector<16x8xf32>
    %123 = vector.broadcast %107 : vector<16x1xf32> to vector<16x8xf32>
    %124 = arith.mulf %122, %123 : vector<16x8xf32>
    %c0_22 = arith.constant 0 : index
    %c0_23 = arith.constant 0 : index
    %125 = vector.load %arg2[%c0_22, %c0_23] : memref<16x8xf32, #tpu.memory_space<vmem>>, vector<16x8xf32>
    tpu.vector_store %arg2[%c0_22, %c0_23], %124 {strides = array<i32>} : memref<16x8xf32, #tpu.memory_space<vmem>>, vector<16x8xf32>,
    return
  }
}

</mosaic_0001>

<llo_original>
// kernel: sim2layer_poly_forward.1
$region0: #{sim2layer_poly_forward.1}
  #allocation0 [shape = 'u32[]', space=smem, size = 0x4, offset = 0x4, fixed_abs, tag = 'smem constant byte address 0x4 - core index']
  #allocation1 [shape = 'u32[144,128]{1,0:T(1,128)}', space=vmem, size = 0x12000, scoped, tag = 'internal scratch']
  %s0 = inlined_call_operand.vmem [shape: f32[16,16], index: 0, kind: input, shape index: {}]
  %s1 = inlined_call_operand.vmem [shape: f32[128,32], index: 1, kind: input, shape index: {}]
  %s2 = inlined_call_operand.vmem [shape: f32[16,8], index: 2, kind: output, shape index: {}]
  %s3 = sld [smem:[#allocation0]]
  $region18: #{sim2layer_poly_forward.1} parent=0
    _
  %s5 = ssub.s32 1, %s3
  %s6 = scalar_select 0, %s5, %s3
  // Predicated region
  $region2: #{sim2layer_poly_forward.1} parent=0 // pred_check
    _
  $region3: #{sim2layer_poly_forward.1} parent=0 // pred_check_branch
    %8 = sbr.rel (0) target = $region5
  $region4: #{sim2layer_poly_forward.1} parent=0 // pred_region
    _
  $region5: #{sim2layer_poly_forward.1} parent=0 // pred_fallthru
    _
  // Predicated region
  $region6: #{sim2layer_poly_forward.1} parent=0 // pred_check
    _
  $region7: #{sim2layer_poly_forward.1} parent=0 // pred_check_branch
    %10 = sbr.rel (0) target = $region9
  $region8: #{sim2layer_poly_forward.1} parent=0 // pred_region
    _
  $region9: #{sim2layer_poly_forward.1} parent=0 // pred_fallthru
    _
  %v11 = vld [vmem:[%s1] sm:$0xff]
  %v12 = vld [vmem:[%s1 + $0x8] sm:$0xff]
  %v13 = vld [vmem:[%s1 + $0x10] sm:$0xff]
  %v14 = vld [vmem:[%s1 + $0x18] sm:$0xff]
  %v15 = vld [vmem:[%s1 + $0x20] sm:$0xff]
  %v16 = vld [vmem:[%s1 + $0x28] sm:$0xff]
  %v17 = vld [vmem:[%s1 + $0x30] sm:$0xff]
  %v18 = vld [vmem:[%s1 + $0x38] sm:$0xff]
  %v19 = vld [vmem:[%s1 + $0x40] sm:$0xff]
  %v20 = vld [vmem:[%s1 + $0x48] sm:$0xff]
  %v21 = vld [vmem:[%s1 + $0x50] sm:$0xff]
  %v22 = vld [vmem:[%s1 + $0x58] sm:$0xff]
  %v23 = vld [vmem:[%s1 + $0x60] sm:$0xff]
  %v24 = vld [vmem:[%s1 + $0x68] sm:$0xff]
  %v25 = vld [vmem:[%s1 + $0x70] sm:$0xff]
  %v26 = vld [vmem:[%s1 + $0x78] sm:$0xff]
  %v27 = vld [vmem:[%s0] sm:$0xff]
  %v28 = vld [vmem:[%s0 + $0x8] sm:$0xff]
  %v29 = vlaneseq
  %v30 = vshrl.u32 %v29, 7
  %v31 = vsub.s32 0, %v30
  %v32 = vrot.slane %v26, %v31
  %vm33 = vcmask 130048
  %v35 = vsel %vm33, %v27, 0
  %v38 = vsel %vm33, %v28, 0
  %40 = vmatprep.subr.mxu0 0.0
  %41 = vmatpush1.msra.mxu0 %v19
  %42 = vmatprep.subr.mxu0 0.0
  %43 = vmatpush1.msra.mxu0 %v20
  %44 = vmatprep.subr.mxu0 0.0
  %45 = vmatpush1.msra.mxu0 0.0
  %46 = vmatprep.subr.mxu0 0.0
  %47 = vmatpush1.msra.mxu0 0.0
  %48 = vmatprep.subr.mxu0 0.0
  %49 = vmatpush1.msra.mxu0 0.0
  %50 = vmatprep.subr.mxu0 0.0
  %51 = vmatpush1.msra.mxu0 0.0
  %52 = vmatprep.subr.mxu0 0.0
  %53 = vmatpush1.msra.mxu0 0.0
  %54 = vmatprep.subr.mxu0 0.0
  %55 = vmatpush1.msra.mxu0 0.0
  %56 = vmatprep.subr.mxu0 0.0
  %57 = vmatpush1.msra.mxu0 0.0
  %58 = vmatprep.subr.mxu0 0.0
  %59 = vmatpush1.msra.mxu0 0.0
  %60 = vmatprep.subr.mxu0 0.0
  %61 = vmatpush1.msra.mxu0 0.0
  %62 = vmatprep.subr.mxu0 0.0
  %63 = vmatpush1.msra.mxu0 0.0
  %64 = vmatprep.subr.mxu0 0.0
  %65 = vmatpush1.msra.mxu0 0.0
  %66 = vmatprep.subr.mxu0 0.0
  %67 = vmatpush1.msra.mxu0 0.0
  %68 = vmatprep.subr.mxu0 0.0
  %69 = vmatpush1.msra.mxu0 0.0
  %70 = vmatprep.subr.mxu0 0.0
  %71 = vmatpush1.msra.mxu0 0.0
  %72 = vmatprep.subr.mxu0 0.0
  %73 = vmatpush1.msra.mxu0 0.0
  %74 = vmatprep.subr.mxu0 0.0
  %75 = vmatpush1.msra.mxu0 0.0
  %76 = vmatprep.subr.mxu0 0.0
  %77 = vmatpush1.msra.mxu0 0.0
  %78 = vmatprep.subr.mxu0 0.0
  %79 = vmatpush1.msra.mxu0 0.0
  %80 = vmatprep.subr.mxu0 0.0
  %81 = vmatpush1.msra.mxu0 0.0
  %82 = vmatprep.subr.mxu0 0.0
  %83 = vmatpush1.msra.mxu0 0.0
  %84 = vmatprep.subr.mxu0 0.0
  %85 = vmatpush1.msra.mxu0 0.0
  %86 = vmatprep.subr.mxu0 0.0
  %87 = vmatpush1.msra.mxu0 0.0
  %88 = vmatprep.subr.mxu0 0.0
  %89 = vmatpush1.msra.mxu0 0.0
  %90 = vmatprep.subr.mxu0 0.0
  %91 = vmatpush1.msra.mxu0 0.0
  %92 = vmatprep.subr.mxu0 0.0
  %93 = vmatpush1.msra.mxu0 0.0
  %94 = vmatprep.subr.mxu0 0.0
  %95 = vmatpush1.msra.mxu0 0.0
  %96 = vmatprep.subr.mxu0 0.0
  %97 = vmatpush1.msra.mxu0 0.0
  %98 = vmatprep.subr.mxu0 0.0
  %99 = vmatpush1.msra.mxu0 0.0
  %100 = vmatprep.subr.mxu0 0.0
  %101 = vmatpush1.msra.mxu0 0.0
  %102 = vmatprep.subr.mxu0 0.0
  %103 = vmatpush1.msra.mxu0 0.0
  %104 = vmatprep.mubr.f32.mxu0 0.0
  %105 = vmatmul.mubr.f32.gmra.mrb[0].mxu0 %v35
  %v106 = vpop.f32.mrb[0].mxu0
  %v107 = vadd.f32 %v32, %v106
  %v108 = vpop.f32.mrb[0].mxu0
  %109 = vmatprep.mubr.f32.mxu0 0.0
  %110 = vmatmul.mubr.f32.gmra.mrb[0].mxu0 %v38
  %v111 = vpop.f32.mrb[0].mxu0
  %v112 = vadd.f32 %v32, %v111
  %v113 = vpop.f32.mrb[0].mxu0
  %114 = vdwg.mxu0
  %v115 = vmax.f32 %v107, 0.0
  %v116 = vmax.f32 %v112, 0.0
  %v117 = vlaneseq
  %v118 = vshrl.u32 %v117, 7
  %v119 = vsub.s32 1, %v118
  %v120 = vrot.slane %v26, %v119
  %vm121 = vcmask 261120
  %v123 = vsel %vm121, %v115, 0
  %v126 = vsel %vm121, %v116, 0
  %128 = vmatprep.subr.mxu0 0.0
  %129 = vmatpush1.msra.mxu0 %v21
  %130 = vmatprep.subr.mxu0 0.0
  %131 = vmatpush1.msra.mxu0 %v22
  %132 = vmatprep.subr.mxu0 0.0
  %133 = vmatpush1.msra.mxu0 %v23
  %134 = vmatprep.subr.mxu0 0.0
  %135 = vmatpush1.msra.mxu0 %v24
  %136 = vmatprep.subr.mxu0 0.0
  %137 = vmatpush1.msra.mxu0 0.0
  %138 = vmatprep.subr.mxu0 0.0
  %139 = vmatpush1.msra.mxu0 0.0
  %140 = vmatprep.subr.mxu0 0.0
  %141 = vmatpush1.msra.mxu0 0.0
  %142 = vmatprep.subr.mxu0 0.0
  %143 = vmatpush1.msra.mxu0 0.0
  %144 = vmatprep.subr.mxu0 0.0
  %145 = vmatpush1.msra.mxu0 0.0
  %146 = vmatprep.subr.mxu0 0.0
  %147 = vmatpush1.msra.mxu0 0.0
  %148 = vmatprep.subr.mxu0 0.0
  %149 = vmatpush1.msra.mxu0 0.0
  %150 = vmatprep.subr.mxu0 0.0
  %151 = vmatpush1.msra.mxu0 0.0
  %152 = vmatprep.subr.mxu0 0.0
  %153 = vmatpush1.msra.mxu0 0.0
  %154 = vmatprep.subr.mxu0 0.0
  %155 = vmatpush1.msra.mxu0 0.0
  %156 = vmatprep.subr.mxu0 0.0
  %157 = vmatpush1.msra.mxu0 0.0
  %158 = vmatprep.subr.mxu0 0.0
  %159 = vmatpush1.msra.mxu0 0.0
  %160 = vmatprep.subr.mxu0 0.0
  %161 = vmatpush1.msra.mxu0 0.0
  %162 = vmatprep.subr.mxu0 0.0
  %163 = vmatpush1.msra.mxu0 0.0
  %164 = vmatprep.subr.mxu0 0.0
  %165 = vmatpush1.msra.mxu0 0.0
  %166 = vmatprep.subr.mxu0 0.0
  %167 = vmatpush1.msra.mxu0 0.0
  %168 = vmatprep.subr.mxu0 0.0
  %169 = vmatpush1.msra.mxu0 0.0
  %170 = vmatprep.subr.mxu0 0.0
  %171 = vmatpush1.msra.mxu0 0.0
  %172 = vmatprep.subr.mxu0 0.0
  %173 = vmatpush1.msra.mxu0 0.0
  %174 = vmatprep.subr.mxu0 0.0
  %175 = vmatpush1.msra.mxu0 0.0
  %176 = vmatprep.subr.mxu0 0.0
  %177 = vmatpush1.msra.mxu0 0.0
  %178 = vmatprep.subr.mxu0 0.0
  %179 = vmatpush1.msra.mxu0 0.0
  %180 = vmatprep.subr.mxu0 0.0
  %181 = vmatpush1.msra.mxu0 0.0
  %182 = vmatprep.subr.mxu0 0.0
  %183 = vmatpush1.msra.mxu0 0.0
  %184 = vmatprep.subr.mxu0 0.0
  %185 = vmatpush1.msra.mxu0 0.0
  %186 = vmatprep.subr.mxu0 0.0
  %187 = vmatpush1.msra.mxu0 0.0
  %188 = vmatprep.subr.mxu0 0.0
  %189 = vmatpush1.msra.mxu0 0.0
  %190 = vmatprep.subr.mxu0 0.0
  %191 = vmatpush1.msra.mxu0 0.0
  %192 = vmatprep.mubr.f32.mxu0 0.0
  %193 = vmatmul.mubr.f32.gmra.mrb[0].mxu0 %v123
  %v194 = vpop.f32.mrb[0].mxu0
  %v195 = vadd.f32 %v120, %v194
  %v196 = vpop.f32.mrb[0].mxu0
  %197 = vmatprep.mubr.f32.mxu0 0.0
  %198 = vmatmul.mubr.f32.gmra.mrb[0].mxu0 %v126
  %v199 = vpop.f32.mrb[0].mxu0
  %v200 = vadd.f32 %v120, %v199
  %v201 = vpop.f32.mrb[0].mxu0
  %202 = vdwg.mxu0
  %v204 = vsel %vm33, %v11, 0
  %v207 = vsel %vm33, %v12, 0
  %v210 = vsel %vm33, %v13, 0
  %v213 = vsel %vm33, %v14, 0
  %v216 = vsel %vm33, %v15, 0
  %v219 = vsel %vm33, %v16, 0
  %v222 = vsel %vm33, %v17, 0
  %v225 = vsel %vm33, %v18, 0
  %227 = vmatprep.subr.mxu0 0.0
  %228 = vmatpush1.msra.mxu0 %v195
  %229 = vmatprep.subr.mxu0 0.0
  %230 = vmatpush1.msra.mxu0 %v200
  %231 = vmatprep.subr.mxu0 0.0
  %232 = vmatpush1.msra.mxu0 0.0
  %233 = vmatprep.subr.mxu0 0.0
  %234 = vmatpush1.msra.mxu0 0.0
  %235 = vmatprep.subr.mxu0 0.0
  %236 = vmatpush1.msra.mxu0 0.0
  %237 = vmatprep.subr.mxu0 0.0
  %238 = vmatpush1.msra.mxu0 0.0
  %239 = vmatprep.subr.mxu0 0.0
  %240 = vmatpush1.msra.mxu0 0.0
  %241 = vmatprep.subr.mxu0 0.0
  %242 = vmatpush1.msra.mxu0 0.0
  %243 = vmatprep.subr.mxu0 0.0
  %244 = vmatpush1.msra.mxu0 0.0
  %245 = vmatprep.subr.mxu0 0.0
  %246 = vmatpush1.msra.mxu0 0.0
  %247 = vmatprep.subr.mxu0 0.0
  %248 = vmatpush1.msra.mxu0 0.0
  %249 = vmatprep.subr.mxu0 0.0
  %250 = vmatpush1.msra.mxu0 0.0
  %251 = vmatprep.subr.mxu0 0.0
  %252 = vmatpush1.msra.mxu0 0.0
  %253 = vmatprep.subr.mxu0 0.0
  %254 = vmatpush1.msra.mxu0 0.0
  %255 = vmatprep.subr.mxu0 0.0
  %256 = vmatpush1.msra.mxu0 0.0
  %257 = vmatprep.subr.mxu0 0.0
  %258 = vmatpush1.msra.mxu0 0.0
  %259 = vmatprep.subr.mxu0 0.0
  %260 = vmatpush1.msra.mxu0 0.0
  %261 = vmatprep.subr.mxu0 0.0
  %262 = vmatpush1.msra.mxu0 0.0
  %263 = vmatprep.subr.mxu0 0.0
  %264 = vmatpush1.msra.mxu0 0.0
  %265 = vmatprep.subr.mxu0 0.0
  %266 = vmatpush1.msra.mxu0 0.0
  %267 = vmatprep.subr.mxu0 0.0
  %268 = vmatpush1.msra.mxu0 0.0
  %269 = vmatprep.subr.mxu0 0.0
  %270 = vmatpush1.msra.mxu0 0.0
  %271 = vmatprep.subr.mxu0 0.0
  %272 = vmatpush1.msra.mxu0 0.0
  %273 = vmatprep.subr.mxu0 0.0
  %274 = vmatpush1.msra.mxu0 0.0
  %275 = vmatprep.subr.mxu0 0.0
  %276 = vmatpush1.msra.mxu0 0.0
  %277 = vmatprep.subr.mxu0 0.0
  %278 = vmatpush1.msra.mxu0 0.0
  %279 = vmatprep.subr.mxu0 0.0
  %280 = vmatpush1.msra.mxu0 0.0
  %281 = vmatprep.subr.mxu0 0.0
  %282 = vmatpush1.msra.mxu0 0.0
  %283 = vmatprep.subr.mxu0 0.0
  %284 = vmatpush1.msra.mxu0 0.0
  %285 = vmatprep.subr.mxu0 0.0
  %286 = vmatpush1.msra.mxu0 0.0
  %287 = vmatprep.subr.mxu0 0.0
  %288 = vmatpush1.msra.mxu0 0.0
  %289 = vmatprep.subr.mxu0 0.0
  %290 = vmatpush1.msra.mxu0 0.0
  %291 = vmatprep.mubr.f32.mxu0 0.0
  %292 = vmatmul.mubr.f32.gmra.mrb[0].mxu0 %v204
  %v293 = vpop.f32.mrb[0].mxu0
  %v294 = vadd.f32 0.0, %v293
  %v295 = vpop.f32.mrb[0].mxu0
  %296 = vmatprep.mubr.f32.mxu0 0.0
  %297 = vmatmul.mubr.f32.gmra.mrb[0].mxu0 %v207
  %v298 = vpop.f32.mrb[0].mxu0
  %v299 = vadd.f32 0.0, %v298
  %v300 = vpop.f32.mrb[0].mxu0
  %301 = vmatprep.mubr.f32.mxu0 0.0
  %302 = vmatmul.mubr.f32.gmra.mrb[0].mxu0 %v210
  %v303 = vpop.f32.mrb[0].mxu0
  %v304 = vadd.f32 0.0, %v303
  %v305 = vpop.f32.mrb[0].mxu0
  %306 = vmatprep.mubr.f32.mxu0 0.0
  %307 = vmatmul.mubr.f32.gmra.mrb[0].mxu0 %v213
  %v308 = vpop.f32.mrb[0].mxu0
  %v309 = vadd.f32 0.0, %v308
  %v310 = vpop.f32.mrb[0].mxu0
  %311 = vmatprep.mubr.f32.mxu0 0.0
  %312 = vmatmul.mubr.f32.gmra.mrb[0].mxu0 %v216
  %v313 = vpop.f32.mrb[0].mxu0
  %v314 = vadd.f32 0.0, %v313
  %v315 = vpop.f32.mrb[0].mxu0
  %316 = vmatprep.mubr.f32.mxu0 0.0
  %317 = vmatmul.mubr.f32.gmra.mrb[0].mxu0 %v219
  %v318 = vpop.f32.mrb[0].mxu0
  %v319 = vadd.f32 0.0, %v318
  %v320 = vpop.f32.mrb[0].mxu0
  %321 = vmatprep.mubr.f32.mxu0 0.0
  %322 = vmatmul.mubr.f32.gmra.mrb[0].mxu0 %v222
  %v323 = vpop.f32.mrb[0].mxu0
  %v324 = vadd.f32 0.0, %v323
  %v325 = vpop.f32.mrb[0].mxu0
  %326 = vmatprep.mubr.f32.mxu0 0.0
  %327 = vmatmul.mubr.f32.gmra.mrb[0].mxu0 %v225
  %v328 = vpop.f32.mrb[0].mxu0
  %v329 = vadd.f32 0.0, %v328
  %v330 = vpop.f32.mrb[0].mxu0
  %331 = vdwg.mxu0
  %vm332 = vcmask 64512
  %v334 = vsel %vm332, %v25, 0
  %v337 = vsel %vm332, %v294, 0
  %v340 = vsel %vm332, %v299, 0
  %v343 = vsel %vm332, %v304, 0
  %v346 = vsel %vm332, %v309, 0
  %v349 = vsel %vm332, %v314, 0
  %v352 = vsel %vm332, %v319, 0
  %v355 = vsel %vm332, %v324, 0
  %v358 = vsel %vm332, %v329, 0
  %360 = vmatprep.subr.mxu0 0.0
  %361 = vmatpush1.xpose.msra.mxu0 %v337
  %362 = vmatprep.subr.mxu0 0.0
  %363 = vmatpush1.xpose.msra.mxu0 %v340
  %364 = vmatprep.subr.mxu0 0.0
  %365 = vmatpush1.xpose.msra.mxu0 %v343
  %366 = vmatprep.subr.mxu0 0.0
  %367 = vmatpush1.xpose.msra.mxu0 %v346
  %368 = vmatprep.subr.mxu0 0.0
  %369 = vmatpush1.xpose.msra.mxu0 %v349
  %370 = vmatprep.subr.mxu0 0.0
  %371 = vmatpush1.xpose.msra.mxu0 %v352
  %372 = vmatprep.subr.mxu0 0.0
  %373 = vmatpush1.xpose.msra.mxu0 %v355
  %374 = vmatprep.subr.mxu0 0.0
  %375 = vmatpush1.xpose.msra.mxu0 %v358
  %376 = vmatprep.subr.mxu0 0.0
  %377 = vmatpush1.xpose.msra.mxu0 0.0
  %378 = vmatprep.subr.mxu0 0.0
  %379 = vmatpush1.xpose.msra.mxu0 0.0
  %380 = vmatprep.subr.mxu0 0.0
  %381 = vmatpush1.xpose.msra.mxu0 0.0
  %382 = vmatprep.subr.mxu0 0.0
  %383 = vmatpush1.xpose.msra.mxu0 0.0
  %384 = vmatprep.subr.mxu0 0.0
  %385 = vmatpush1.xpose.msra.mxu0 0.0
  %386 = vmatprep.subr.mxu0 0.0
  %387 = vmatpush1.xpose.msra.mxu0 0.0
  %388 = vmatprep.subr.mxu0 0.0
  %389 = vmatpush1.xpose.msra.mxu0 0.0
  %390 = vmatprep.subr.mxu0 0.0
  %391 = vmatpush1.xpose.msra.mxu0 0.0
  %392 = vmatprep.subr.mxu0 0.0
  %393 = vmatpush1.xpose.msra.mxu0 0.0
  %394 = vmatprep.subr.mxu0 0.0
  %395 = vmatpush1.xpose.msra.mxu0 0.0
  %396 = vmatprep.subr.mxu0 0.0
  %397 = vmatpush1.xpose.msra.mxu0 0.0
  %398 = vmatprep.subr.mxu0 0.0
  %399 = vmatpush1.xpose.msra.mxu0 0.0
  %400 = vmatprep.subr.mxu0 0.0
  %401 = vmatpush1.xpose.msra.mxu0 0.0
  %402 = vmatprep.subr.mxu0 0.0
  %403 = vmatpush1.xpose.msra.mxu0 0.0
  %404 = vmatprep.subr.mxu0 0.0
  %405 = vmatpush1.xpose.msra.mxu0 0.0
  %406 = vmatprep.subr.mxu0 0.0
  %407 = vmatpush1.xpose.msra.mxu0 0.0
  %408 = vmatprep.subr.mxu0 0.0
  %409 = vmatpush1.xpose.msra.mxu0 0.0
  %410 = vmatprep.subr.mxu0 0.0
  %411 = vmatpush1.xpose.msra.mxu0 0.0
  %412 = vmatprep.subr.mxu0 0.0
  %413 = vmatpush1.xpose.msra.mxu0 0.0
  %414 = vmatprep.subr.mxu0 0.0
  %415 = vmatpush1.xpose.msra.mxu0 0.0
  %416 = vmatprep.subr.mxu0 0.0
  %417 = vmatpush1.xpose.msra.mxu0 0.0
  %418 = vmatprep.subr.mxu0 0.0
  %419 = vmatpush1.xpose.msra.mxu0 0.0
  %420 = vmatprep.subr.mxu0 0.0
  %421 = vmatpush1.xpose.msra.mxu0 0.0
  %422 = vmatprep.subr.mxu0 0.0
  %423 = vmatpush1.xpose.msra.mxu0 0.0
  %424 = vmatprep.mubr.f32.mxu0 0.0
  %425 = vmatmul.mubr.f32.gmra.mrb[0].mxu0 %v334
  %v426 = vpop.f32.mrb[0].mxu0
  %v427 = vadd.f32 0.0, %v426
  %v428 = vpop.f32.mrb[0].mxu0
  %429 = vdwg.mxu0
  %v431 = vrot.slane %v427, 6
  %v433 = vadd.f32 %v26, %v431
  %v434 = vrot.slane %v427, 7
  %435 = vrot.lane.b32.xlu0 %v434, 112
  %v436 = vpop.permute.xlu0 %435
  %v438 = vadd.f32 %v433, %v436
  %439 = vrot.lane.b32.xlu0 %v427, 96
  %v440 = vpop.permute.xlu0 %439
  %v442 = vadd.f32 %v438, %v440
  %v443 = vrot.slane %v427, 1
  %444 = vrot.lane.b32.xlu0 %v443, 80
  %v445 = vpop.permute.xlu0 %444
  %v447 = vadd.f32 %v442, %v445
  %v448 = vrot.slane %v427, 2
  %v450 = vadd.f32 %v447, %v448
  %451 = vrot.lane.b32.xlu0 %v448, 112
  %v452 = vpop.permute.xlu0 %451
  %v454 = vadd.f32 %v447, %v452
  %455 = vrot.lane.b32.xlu0 %v448, 96
  %v456 = vpop.permute.xlu0 %455
  %v458 = vadd.f32 %v447, %v456
  %459 = vrot.lane.b32.xlu0 %v448, 80
  %v460 = vpop.permute.xlu0 %459
  %v462 = vadd.f32 %v447, %v460
  %v464 = vrot.slane %v450, 2
  %v467 = vrot.slane %v454, 1
  %v470 = vrot.slane %v462, 7
  %vm472 = vcmask 1040384
  %v473 = vsel %vm472, %v464, %v467
  %vm474 = vcmask 1041408
  %v475 = vsel %vm474, %v473, %v458
  %vm476 = vcmask 1042432
  %v477 = vsel %vm476, %v475, %v470
  %v478 = vxor.u32 %v477, 2147483648
  %v479 = vmul.f32 %v478, 1.442695
  %v480 = vpow.pop %v479
  %v481 = vadd.f32 %v480, 1.0
  %v482 = vrcp.pop %v481
  %v483 = vmul.f32 1.0, %v482
  %v484 = vmul.f32 %v483, 1.442695
  %v485 = vpow.pop %v484
  %v486 = vlaneseq
  %v487 = vshrl.u32 %v486, 7
  %v488 = vsub.s32 0, %v487
  %v489 = vrot.slane %v485, %v488
  %v490 = vlaneseq
  %v491 = vshrl.u32 %v490, 7
  %v492 = vsub.s32 1, %v491
  %v493 = vrot.slane %v485, %v492
  %v494 = vlaneseq
  %v495 = vshrl.u32 %v494, 7
  %v496 = vsub.s32 2, %v495
  %v497 = vrot.slane %v485, %v496
  %v498 = vlaneseq
  %v499 = vshrl.u32 %v498, 7
  %v500 = vsub.s32 3, %v499
  %v501 = vrot.slane %v485, %v500
  %vm502 = vcmask 1043456
  %v503 = vsel %vm502, %v489, %v493
  %v504 = vsel %vm502, %v497, %v501
  %v505 = vlaneseq
  %v506 = vshrl.u32 %v505, 7
  %v507 = vadd.s32 %v506, 8
  %v508 = vlaneseq
  %v509 = vand.u32 %v508, 127
  %vm510 = vcmp.lt.s32.totalorder %v506, 0
  %v511 = vsub.s32 0, %v506
  %v512 = vsel %vm510, %v511, %v506
  %v513 = vshrl.u32 %v512, 2
  %v514 = vand.u32 %v512, 3
  %v515 = vsub.s32 0, %v514
  %v516 = vsel %vm510, %v515, %v514
  %vm517 = vcmp.lt.s32.totalorder %v507, 0
  %v518 = vsub.s32 0, %v507
  %v519 = vsel %vm517, %v518, %v507
  %v520 = vshrl.u32 %v519, 2
  %v521 = vand.u32 %v519, 3
  %v522 = vsub.s32 0, %v521
  %v523 = vsel %vm517, %v522, %v521
  %vm524 = vcmp.ne.s32.totalorder %v516, 0
  %vm525 = vcmp.ne.s32.totalorder %v523, 0
  %vm526 = vcmp.lt.s32.totalorder %v516, 0
  %vm527 = vcmp.lt.s32.totalorder %v523, 0
  %vm528 = vmand %vm526, %vm524
  %vm529 = vmand %vm527, %vm525
  %v530 = vadd.s32 %v516, 4
  %v531 = vadd.s32 %v523, 4
  %v532 = vsel %vm528, %v530, %v516
  %v533 = vsel %vm529, %v531, %v523
  %v534 = vmul.u32 %v532, 4
  %v535 = vmul.u32 %v533, 4
  %vm536 = vcmp.eq.s32.totalorder %v509, %v534
  %vm537 = vcmp.eq.s32.totalorder %v509, %v535
  %v538 = vsel %vm536, %v503, 0.0
  %v539 = vsel %vm537, %v504, 0.0
  %v540 = vsel %vm33, %v538, 0.0
  %541 = vadd.xlane.f32.xlu0 %v540
  %v542 = vpop.xlane.xlu0 %541
  %v543 = vsel %vm33, %v539, 0.0
  %544 = vadd.xlane.f32.xlu0 %v543
  %v545 = vpop.xlane.xlu0 %544
  %v546 = vadd.s32 %v534, 1
  %v547 = vadd.s32 %v535, 1
  %vm548 = vcmp.eq.s32.totalorder %v509, %v546
  %vm549 = vcmp.eq.s32.totalorder %v509, %v547
  %v550 = vsel %vm548, %v503, 0.0
  %v551 = vsel %vm549, %v504, 0.0
  %v552 = vsel %vm33, %v550, 0.0
  %553 = vadd.xlane.f32.xlu0 %v552
  %v554 = vpop.xlane.xlu0 %553
  %v555 = vsel %vm33, %v551, 0.0
  %556 = vadd.xlane.f32.xlu0 %v555
  %v557 = vpop.xlane.xlu0 %556
  %v558 = vadd.s32 %v534, 2
  %v559 = vadd.s32 %v535, 2
  %vm560 = vcmp.eq.s32.totalorder %v509, %v558
  %vm561 = vcmp.eq.s32.totalorder %v509, %v559
  %v562 = vsel %vm560, %v503, 0.0
  %v563 = vsel %vm561, %v504, 0.0
  %v564 = vsel %vm33, %v562, 0.0
  %565 = vadd.xlane.f32.xlu0 %v564
  %v566 = vpop.xlane.xlu0 %565
  %v567 = vsel %vm33, %v563, 0.0
  %568 = vadd.xlane.f32.xlu0 %v567
  %v569 = vpop.xlane.xlu0 %568
  %v570 = vadd.s32 %v534, 3
  %v571 = vadd.s32 %v535, 3
  %vm572 = vcmp.eq.s32.totalorder %v509, %v570
  %vm573 = vcmp.eq.s32.totalorder %v509, %v571
  %v574 = vsel %vm572, %v503, 0.0
  %v575 = vsel %vm573, %v504, 0.0
  %v576 = vsel %vm33, %v574, 0.0
  %577 = vadd.xlane.f32.xlu0 %v576
  %v578 = vpop.xlane.xlu0 %577
  %v579 = vsel %vm33, %v575, 0.0
  %580 = vadd.xlane.f32.xlu0 %v579
  %v581 = vpop.xlane.xlu0 %580
  %v582 = vadd.f32 %v542, %v554
  %v583 = vadd.f32 %v545, %v557
  %v584 = vadd.f32 %v582, %v566
  %v585 = vadd.f32 %v583, %v569
  %v586 = vadd.f32 %v584, %v578
  %v587 = vadd.f32 %v585, %v581
  %v588 = vrcp.pop %v586
  %v589 = vrcp.pop %v587
  %v590 = vmul.f32 %v542, %v294
  %v591 = vmul.f32 %v545, %v299
  %v592 = vmul.f32 %v554, %v304
  %v593 = vmul.f32 %v557, %v309
  %v594 = vadd.f32 %v590, %v592
  %v595 = vadd.f32 %v591, %v593
  %v596 = vmul.f32 %v566, %v314
  %v597 = vmul.f32 %v569, %v319
  %v598 = vadd.f32 %v594, %v596
  %v599 = vadd.f32 %v595, %v597
  %v600 = vmul.f32 %v578, %v324
  %v601 = vmul.f32 %v581, %v329
  %v602 = vadd.f32 %v598, %v600
  %v603 = vadd.f32 %v599, %v601
  %v604 = vmul.f32 %v602, %v588
  %v605 = vmul.f32 %v603, %v589
  %606 = vst.msk [vmem:[%s2] sm:$0xff] %vm332, %v604
  %607 = vst.msk [vmem:[%s2 + $0x8] sm:$0xff] %vm332, %v605
  // Predicated region
  $region10: #{sim2layer_poly_forward.1} parent=0 // pred_check
    _
  $region11: #{sim2layer_poly_forward.1} parent=0 // pred_check_branch
    %609 = sbr.rel (0) target = $region13
  $region12: #{sim2layer_poly_forward.1} parent=0 // pred_region
    _
  $region13: #{sim2layer_poly_forward.1} parent=0 // pred_fallthru
    _
  // Predicated region
  $region14: #{sim2layer_poly_forward.1} parent=0 // pred_check
    _
  $region15: #{sim2layer_poly_forward.1} parent=0 // pred_check_branch
    %611 = sbr.rel (0) target = $region17
  $region16: #{sim2layer_poly_forward.1} parent=0 // pred_region
    _
  $region17: #{sim2layer_poly_forward.1} parent=0 // pred_fallthru
    _

</llo_original>
